<compile_context>
chip_gen: v5e
topology: v5e:2x2
jax: 0.10.0
libtpu: 0.0.40
codegen_flags: <defaults>
</compile_context>

<pallas_src>
import functools

import jax
import jax.numpy as jnp
from jax.experimental import pallas as pl
from jax.experimental.pallas import tpu as pltpu


def _round_up(n, m):
    return ((n + m - 1) // m) * m


def gated_attention_kernel(x_ref, w_ref, bias_ref, ww_ref, o_ref, *,
                           s_valid, matmul_dtype, approx_softmax):
    TB, S_pad, D = x_ref.shape
    Hp = w_ref.shape[1] // 2

    x = x_ref[...]                                   # (TB, S_pad, D)
    # S_pad % 8 == 0 (enforced by the wrapper) -> merging the leading dims is
    # a sublane regroup, not a relayout copy.
    x2 = x.reshape(TB * S_pad, D)

    w = w_ref[...]                                   # (D, 2*Hp) = Wa^T || Wb^T
    bias = bias_ref[...]                             # (1, 2*Hp) = ba  || bb
    ww = ww_ref[...]                                 # (1, Hp)

    lhs, rhs = x2, w
    if matmul_dtype is not None:
        lhs = lhs.astype(matmul_dtype)
        rhs = rhs.astype(matmul_dtype)

    # Single fused MXU matmul for both gate branches, f32 accumulation.
    ab = jnp.dot(lhs, rhs, preferred_element_type=jnp.float32) + bias

    # Split at the lane-tile-aligned boundary Hp (Hp % 128 == 0): free slices.
    a = jnp.tanh(ab[:, :Hp])                         # (TB*S, Hp)  EUP
    b = jax.nn.sigmoid(ab[:, Hp:])                   # (TB*S, Hp)  EUP
    g = a * b                                        # (TB*S, Hp)  VPU

    # Attention logits: VPU mul + lane reduce over Hp (cheaper than an N=1 MXU
    # matmul). Padded H lanes contribute 0 (zero weight columns -> a = 0).
    # bw is intentionally omitted: softmax(c + bw) == softmax(c).
    c = jnp.sum(g * ww, axis=-1, keepdims=True)      # (TB*S, 1)
    c = c.reshape(TB, S_pad, 1)                      # S stays on sublanes

    if s_valid != S_pad:
        # Compile-time-constant mask for zero-padded instances.
        row = jax.lax.broadcasted_iota(jnp.int32, (TB, S_pad, 1), 1)
        c = jnp.where(row < s_valid, c, -1e30)

    # Softmax over the instance axis (sublane reductions, XLU).
    m = jnp.max(c, axis=1, keepdims=True)            # (TB, 1, 1)
    e = jnp.exp(c - m)                               # (TB, S_pad, 1)
    denom = jnp.sum(e, axis=1, keepdims=True)        # (TB, 1, 1)
    if approx_softmax:
        prob = e * pl.reciprocal(denom, approx=True)  # EUP slot, ~free
    else:
        prob = e / denom

    # Weighted pooling over S on the VPU (prob broadcasts along lanes) + a
    # sublane reduce; avoids TB batched M=1 MXU pushes.
    pooled = jnp.sum(prob * x, axis=1)               # (TB, D)
    o_ref[...] = pooled.astype(o_ref.dtype)


def gated_attention(x, wa, ba, wb, bb, ww, bw=None, *, batch_block=None,
                    matmul_dtype=None, approx_softmax=False,
                    vmem_budget_bytes=32 * 1024 * 1024,
                    vmem_limit_bytes=48 * 1024 * 1024):
    """Pallas GatedAttention forward.

    bw is accepted for interface parity but not needed: it is added uniformly
    over S and cancels in the softmax. Set matmul_dtype=jnp.bfloat16 for MXU
    throughput (f32 accumulation is kept); approx_softmax=True routes the
    softmax reciprocal to the EUP (slightly inexact probabilities).
    """
    x = jnp.asarray(x)
    B, S, D = x.shape
    H = wa.shape[0]
    f32 = jnp.float32

    # ---- host-side parameter prep -----------------------------------------
    # Pad H up to a lane-tile multiple and fuse the two gate projections into
    # one (D, 2*Hp) weight + one (1, 2*Hp) bias.
    Hp = _round_up(H, 128)
    wa_t = jnp.zeros((D, Hp), f32).at[:, :H].set(jnp.asarray(wa, f32).T)
    wb_t = jnp.zeros((D, Hp), f32).at[:, :H].set(jnp.asarray(wb, f32).T)
    w_fused = jnp.concatenate([wa_t, wb_t], axis=1)                 # (D, 2*Hp)
    ba_p = jnp.zeros((Hp,), f32).at[:H].set(jnp.asarray(ba, f32).reshape(H))
    bb_p = jnp.zeros((Hp,), f32).at[:H].set(jnp.asarray(bb, f32).reshape(H))
    bias_fused = jnp.concatenate([ba_p, bb_p]).reshape(1, 2 * Hp)   # (1, 2*Hp)
    ww_p = jnp.zeros((1, Hp), f32).at[:, :H].set(
        jnp.asarray(ww, f32).reshape(1, H))                         # (1, Hp)
    if matmul_dtype is not None:
        w_fused = w_fused.astype(matmul_dtype)

    # ---- pad the instance axis so the (TB*S, D) merge is layout-free -------
    S_pad = _round_up(S, 8)
    if S_pad != S:
        x = jnp.pad(x, ((0, 0), (0, S_pad - S), (0, 0)))

    # ---- VMEM-aware batch-tile selection ------------------------------------
    x_item = jnp.dtype(x.dtype).itemsize
    w_item = jnp.dtype(w_fused.dtype).itemsize

    def step_bytes(tb):
        xb = 2 * tb * S_pad * D * x_item                 # x tile, double-buffered
        ob = 2 * tb * D * x_item                         # out tile, double-buffered
        wb_ = D * 2 * Hp * w_item + 3 * Hp * 4           # single-buffered consts
        tmp = tb * S_pad * (D + 5 * Hp + 8) * 4          # f32 body temporaries
        return xb + ob + wb_ + tmp

    if batch_block is not None:
        tb = int(batch_block)
    elif B < 8:
        tb = B                                           # block == full dim is legal
    else:
        tb = (B // 8) * 8                                # multiple-of-8 blocks
        if B >= 16:
            # keep grid >= 2 so the "parallel" axis can shard over 2 TCs (v7x)
            tb = min(tb, max(8, ((B // 2) // 8) * 8))
        while tb > 8 and step_bytes(tb) > vmem_budget_bytes:
            tb -= 8

    B_pad = _round_up(B, tb)
    if B_pad != B:
        # Zero rows pool to zero and are sliced off below.
        x = jnp.pad(x, ((0, B_pad - B), (0, 0), (0, 0)))
    grid = (B_pad // tb,)

    kernel = functools.partial(gated_attention_kernel, s_valid=S,
                               matmul_dtype=matmul_dtype,
                               approx_softmax=approx_softmax)

    def const(shape):
        # Constant-index resident block; single-buffered to halve its VMEM use.
        return pl.BlockSpec(shape, lambda i: tuple(0 for _ in shape),
                            pipeline_mode=pl.Buffered(1))

    out = pl.pallas_call(
        kernel,
        out_shape=jax.ShapeDtypeStruct((B_pad, D), x.dtype),
        grid=grid,
        in_specs=[
            pl.BlockSpec((tb, S_pad, D), lambda i: (i, 0, 0)),   # x: TB rows/step
            const((D, 2 * Hp)),                                  # Wa^T || Wb^T
            const((1, 2 * Hp)),                                  # ba || bb
            const((1, Hp)),                                      # Ww
        ],
        out_specs=pl.BlockSpec((tb, D), lambda i: (i, 0)),
        compiler_params=pltpu.CompilerParams(
            dimension_semantics=("parallel",),
            vmem_limit_bytes=vmem_limit_bytes),
    )(x, w_fused, bias_fused, ww_p)
    return out[:B]


def gated_attention_ref(x, wa, ba, wb, bb, ww, bw):
    a = jnp.tanh(jnp.einsum('bsd,hd->bsh', x, wa) + ba)
    b = jax.nn.sigmoid(jnp.einsum('bsd,hd->bsh', x, wb) + bb)
    c = jnp.einsum('bsh,oh->bso', a * b, ww) + bw            # (B, S, 1)
    prob = jax.nn.softmax(c, axis=1)
    return jnp.sum(prob * x, axis=1)


if __name__ == "__main__":
    B, S, D, H = 2, 8, 32, 16

    key = jax.random.PRNGKey(0)
    kx, kwa, kba, kwb, kbb, kww, kbw = jax.random.split(key, 7)

    x = jax.random.normal(kx, (B, S, D), dtype=jnp.float32)

    # Deterministic parameter init (nn.Linear shapes: W (out, in), b (out,))
    wa = jax.random.normal(kwa, (H, D), dtype=jnp.float32) * 0.1
    ba = jax.random.normal(kba, (H,), dtype=jnp.float32) * 0.1
    wb = jax.random.normal(kwb, (H, D), dtype=jnp.float32) * 0.1
    bb = jax.random.normal(kbb, (H,), dtype=jnp.float32) * 0.1
    ww = jax.random.normal(kww, (1, H), dtype=jnp.float32) * 0.1
    bw = jax.random.normal(kbw, (1,), dtype=jnp.float32) * 0.1

    out = gated_attention(x, wa, ba, wb, bb, ww, bw)
    out = jax.block_until_ready(out)

    ref = gated_attention_ref(x, wa, ba, wb, bb, ww, bw)
    assert out.shape == (B, D)
    assert jnp.allclose(out, ref, atol=1e-5, rtol=1e-5), (
        f"max err {jnp.max(jnp.abs(out - ref))}")

    print("KERNEL_OK")
</pallas_src>

<mosaic_0001>
module attributes {stable_mosaic.version = 11 : i64} {
  func.func @gated_attention_kernel(%arg0: i32, %arg1: memref<2x8x32xf32, #tpu.memory_space<vmem>>, %arg2: memref<32x256xf32, #tpu.memory_space<vmem>>, %arg3: memref<1x256xf32, #tpu.memory_space<vmem>>, %arg4: memref<1x128xf32, #tpu.memory_space<vmem>>, %arg5: memref<2x32xf32, #tpu.memory_space<vmem>>) attributes {dimension_semantics = [#tpu.dimension_semantics<parallel>], iteration_bounds = array<i64: 1>, scalar_prefetch = 0 : i64, scratch_operands = 0 : i64, tpu.core_type = #tpu.core_type<tc>, window_params = [{transform_indices = @transform_0, window_bounds = array<i64: 2, 8, 32>}, {pipeline_mode = #tpu.pipeline_mode<synchronous>, transform_indices = @transform_1, window_bounds = array<i64: 32, 256>}, {pipeline_mode = #tpu.pipeline_mode<synchronous>, transform_indices = @transform_2, window_bounds = array<i64: 1, 256>}, {pipeline_mode = #tpu.pipeline_mode<synchronous>, transform_indices = @transform_3, window_bounds = array<i64: 1, 128>}, {transform_indices = @transform_4, window_bounds = array<i64: 2, 32>}]} {
    %c0 = arith.constant 0 : index
    %c0_0 = arith.constant 0 : index
    %c0_1 = arith.constant 0 : index
    %0 = vector.load %arg1[%c0, %c0_0, %c0_1] : memref<2x8x32xf32, #tpu.memory_space<vmem>>, vector<2x8x32xf32>
    %1 = vector.shape_cast %0 : vector<2x8x32xf32> to vector<16x32xf32>
    %c0_2 = arith.constant 0 : index
    %c0_3 = arith.constant 0 : index
    %2 = vector.load %arg2[%c0_2, %c0_3] : memref<32x256xf32, #tpu.memory_space<vmem>>, vector<32x256xf32>
    %c0_4 = arith.constant 0 : index
    %c0_5 = arith.constant 0 : index
    %3 = vector.load %arg3[%c0_4, %c0_5] : memref<1x256xf32, #tpu.memory_space<vmem>>, vector<1x256xf32>
    %c0_6 = arith.constant 0 : index
    %c0_7 = arith.constant 0 : index
    %4 = vector.load %arg4[%c0_6, %c0_7] : memref<1x128xf32, #tpu.memory_space<vmem>>, vector<1x128xf32>
    %cst = arith.constant dense<0.000000e+00> : vector<16x256xf32>
    %5 = tpu.matmul %1, %2, %cst {dimension_numbers = #tpu.dot_dimension_numbers<[1], [0], [0], [1], [0, 0, 1, 1], [], []>} : vector<16x32xf32>, vector<32x256xf32>, vector<16x256xf32> -> vector<16x256xf32>
    %6 = vector.broadcast %3 : vector<1x256xf32> to vector<16x256xf32>
    %7 = arith.addf %5, %6 : vector<16x256xf32>
    %8 = vector.extract_strided_slice %7 {offsets = [0, 0], sizes = [16, 128], strides = [1, 1]} : vector<16x256xf32> to vector<16x128xf32>
    %9 = math.tanh %8 : vector<16x128xf32>
    %10 = vector.extract_strided_slice %7 {offsets = [0, 128], sizes = [16, 128], strides = [1, 1]} : vector<16x256xf32> to vector<16x128xf32>
    %11 = arith.negf %10 : vector<16x128xf32>
    %12 = math.exp %11 : vector<16x128xf32>
    %cst_8 = arith.constant 1.000000e+00 : f32
    %13 = vector.broadcast %cst_8 : f32 to vector<16x128xf32>
    %14 = arith.addf %13, %12 : vector<16x128xf32>
    %15 = arith.divf %13, %14 : vector<16x128xf32>
    %16 = arith.mulf %9, %15 : vector<16x128xf32>
    %17 = vector.broadcast %4 : vector<1x128xf32> to vector<16x128xf32>
    %18 = arith.mulf %16, %17 : vector<16x128xf32>
    %cst_9 = arith.constant dense<0.000000e+00> : vector<16xf32>
    %19 = vector.multi_reduction <add>, %18, %cst_9 [1] : vector<16x128xf32> to vector<16xf32>
    %20 = vector.shape_cast %19 : vector<16xf32> to vector<16x1xf32>
    %21 = vector.shape_cast %20 : vector<16x1xf32> to vector<2x8x1xf32>
    %cst_10 = arith.constant dense<0xFF800000> : vector<2x1xf32>
    %22 = vector.multi_reduction <maximumf>, %21, %cst_10 [1] : vector<2x8x1xf32> to vector<2x1xf32>
    %23 = vector.shape_cast %22 : vector<2x1xf32> to vector<2x1x1xf32>
    %24 = vector.broadcast %23 : vector<2x1x1xf32> to vector<2x8x1xf32>
    %25 = arith.subf %21, %24 : vector<2x8x1xf32>
    %26 = math.exp %25 : vector<2x8x1xf32>
    %cst_11 = arith.constant dense<0.000000e+00> : vector<2x1xf32>
    %27 = vector.multi_reduction <add>, %26, %cst_11 [1] : vector<2x8x1xf32> to vector<2x1xf32>
    %28 = vector.shape_cast %27 : vector<2x1xf32> to vector<2x1x1xf32>
    %29 = vector.broadcast %28 : vector<2x1x1xf32> to vector<2x8x1xf32>
    %30 = arith.divf %26, %29 : vector<2x8x1xf32>
    %31 = vector.broadcast %30 : vector<2x8x1xf32> to vector<2x8x32xf32>
    %32 = arith.mulf %31, %0 : vector<2x8x32xf32>
    %cst_12 = arith.constant dense<0.000000e+00> : vector<2x32xf32>
    %33 = vector.multi_reduction <add>, %32, %cst_12 [1] : vector<2x8x32xf32> to vector<2x32xf32>
    %c0_13 = arith.constant 0 : index
    %c0_14 = arith.constant 0 : index
    %34 = vector.load %arg5[%c0_13, %c0_14] : memref<2x32xf32, #tpu.memory_space<vmem>>, vector<2x32xf32>
    tpu.vector_store %arg5[%c0_13, %c0_14], %33 {strides = array<i32>} : memref<2x32xf32, #tpu.memory_space<vmem>>, vector<2x32xf32>,
    return
  }
  func.func @transform_0(%arg0: i32) -> (i32, i32, i32) {
    %c0_i32 = arith.constant 0 : i32
    %c0_i32_0 = arith.constant 0 : i32
    %c0_i32_1 = arith.constant 0 : i32
    return %arg0, %c0_i32, %c0_i32_0 : i32, i32, i32
  }
  func.func @transform_1(%arg0: i32) -> (i32, i32) {
    %c0_i32 = arith.constant 0 : i32
    %c0_i32_0 = arith.constant 0 : i32
    %c0_i32_1 = arith.constant 0 : i32
    return %c0_i32, %c0_i32_0 : i32, i32
  }
  func.func @transform_2(%arg0: i32) -> (i32, i32) {
    %c0_i32 = arith.constant 0 : i32
    %c0_i32_0 = arith.constant 0 : i32
    %c0_i32_1 = arith.constant 0 : i32
    return %c0_i32, %c0_i32_0 : i32, i32
  }
  func.func @transform_3(%arg0: i32) -> (i32, i32) {
    %c0_i32 = arith.constant 0 : i32
    %c0_i32_0 = arith.constant 0 : i32
    %c0_i32_1 = arith.constant 0 : i32
    return %c0_i32, %c0_i32_0 : i32, i32
  }
  func.func @transform_4(%arg0: i32) -> (i32, i32) {
    %c0_i32 = arith.constant 0 : i32
    %c0_i32_0 = arith.constant 0 : i32
    return %arg0, %c0_i32 : i32, i32
  }
}

</mosaic_0001>

<llo_original>
// kernel: tpu_custom_call.1
$region0: #{tpu_custom_call.1}
  #allocation0 [shape = 'u32[]', space=smem, size = 0x4, offset = 0x4, fixed_abs, tag = 'smem constant byte address 0x4 - core index']
  #allocation1 [shape = 'u32[72,128]{1,0:T(1,128)}', space=vmem, size = 0x9000, scoped, tag = 'internal scratch']
  %s0 = inlined_call_operand.hbm [shape: f32[2,8,32], index: 0, kind: input, shape index: {}]
  %s1 = inlined_call_operand.hbm [shape: f32[32,256], index: 1, kind: input, shape index: {}]
  %s2 = inlined_call_operand.hbm [shape: f32[1,256], index: 2, kind: input, shape index: {}]
  %s3 = inlined_call_operand.vmem [shape: f32[1,128], index: 3, kind: input, shape index: {}]
  %s4 = inlined_call_operand.hbm [shape: f32[2,32], index: 4, kind: output, shape index: {}]
  %s5 = sld [smem:[#allocation0]]
  $region38: #{tpu_custom_call.1} parent=0
    _
  %s7 = ssub.s32 1, %s5
  %s8 = scalar_select 0, %s7, %s5
  $region1: #{tpu_custom_call.1} parent=0
    #allocation2 [shape = 'u8[8192]{0}', space=vmem, size = 0x2000, scoped, tag = 'input window, operand 0, single buffered']
    #allocation3 [shape = 's32[1]{0}', space=sflag, size = 0x4, scoped, tag = 'scoped memory for tpu_custom_call.1']
    #allocation4 [shape = 's32[1]{0}', space=sflag, size = 0x4, scoped, tag = 'scoped memory for tpu_custom_call.1']
    #allocation5 [shape = 'u8[32768]{0}', space=vmem, size = 0x8000, scoped, tag = 'input window, operand 1, single buffered']
    #allocation6 [shape = 's32[1]{0}', space=sflag, size = 0x4, scoped, tag = 'scoped memory for tpu_custom_call.1']
    #allocation7 [shape = 'u8[1024]{0}', space=vmem, size = 0x400, scoped, tag = 'input window, operand 2, single buffered']
    #allocation8 [shape = 'u8[1024]{0}', space=vmem, size = 0x400, scoped, tag = 'output window, operand 0, single buffered']
    %9 = vsyncpa [#allocation3], 0
    %10 = vsyncpa [#allocation6], 0
    %11 = vsyncpa [#allocation4], 0
    // Predicated region
    $region2: #{tpu_custom_call.1} parent=1 // pred_check
      _
    $region3: #{tpu_custom_call.1} parent=1 // pred_check_branch
      %13 = sbr.rel (0) target = $region5
    $region4: #{tpu_custom_call.1} parent=1 // pred_region
      %15 = vsyncadd [#allocation3], 0
      %s16 = sshll.u32 %s0, 4
      %s17 = int_to_ptr.hbm [resolvable:$true] %s16
      %s18 = sshll.u32 [#allocation2], 4
      %s19 = int_to_ptr.vmem [resolvable:$true] %s18
      %24 = dma.hbm_to_vmem [thread:$0]  %s17, 256, %s19, [#allocation3], 128, 128, 8
    $region5: #{tpu_custom_call.1} parent=1 // pred_fallthru
      _
    // Predicated region
    $region6: #{tpu_custom_call.1} parent=1 // pred_check
      _
    $region7: #{tpu_custom_call.1} parent=1 // pred_check_branch
      %26 = sbr.rel (0) target = $region9
    $region8: #{tpu_custom_call.1} parent=1 // pred_region
      %28 = vsyncadd [#allocation6], 0
      %s29 = sshll.u32 %s1, 4
      %s30 = int_to_ptr.hbm [resolvable:$true] %s29
      %s31 = sshll.u32 [#allocation5], 4
      %s32 = int_to_ptr.vmem [resolvable:$true] %s31
      %37 = dma.hbm_to_vmem [thread:$0]  %s30, 1024, %s32, [#allocation6], 256, 256, 16
    $region9: #{tpu_custom_call.1} parent=1 // pred_fallthru
      _
    // Predicated region
    $region10: #{tpu_custom_call.1} parent=1 // pred_check
      _
    $region11: #{tpu_custom_call.1} parent=1 // pred_check_branch
      %39 = sbr.rel (0) target = $region13
    $region12: #{tpu_custom_call.1} parent=1 // pred_region
      %41 = vsyncadd [#allocation6], 0
      %s43 = sshll.u32 %s2, 4
      %s44 = int_to_ptr.hbm [resolvable:$true] %s43
      %s45 = sshll.u32 [#allocation7], 4
      %s46 = int_to_ptr.vmem [resolvable:$true] %s45
      %48 = dma.hbm_to_vmem [thread:$0]  %s44, 32, %s46, [#allocation6]
    $region13: #{tpu_custom_call.1} parent=1 // pred_fallthru
      _
    // Predicated region
    $region14: #{tpu_custom_call.1} parent=1 // pred_check
      _
    $region15: #{tpu_custom_call.1} parent=1 // pred_check_branch
      %50 = sbr.rel (0) target = $region17
    $region16: #{tpu_custom_call.1} parent=1 // pred_region
      _
    $region17: #{tpu_custom_call.1} parent=1 // pred_fallthru
      _
    // Predicated region
    $region18: #{tpu_custom_call.1} parent=1 // pred_check
      _
    $region19: #{tpu_custom_call.1} parent=1 // pred_check_branch
      %52 = sbr.rel (0) target = $region21
    $region20: #{tpu_custom_call.1} parent=1 // pred_region
      %54 = dma.done [#allocation3], 256
    $region21: #{tpu_custom_call.1} parent=1 // pred_fallthru
      _
    // Predicated region
    $region22: #{tpu_custom_call.1} parent=1 // pred_check
      _
    $region23: #{tpu_custom_call.1} parent=1 // pred_check_branch
      %56 = sbr.rel (0) target = $region25
    $region24: #{tpu_custom_call.1} parent=1 // pred_region
      %58 = dma.done [#allocation6], 1024
    $region25: #{tpu_custom_call.1} parent=1 // pred_fallthru
      _
    // Predicated region
    $region26: #{tpu_custom_call.1} parent=1 // pred_check
      _
    $region27: #{tpu_custom_call.1} parent=1 // pred_check_branch
      %60 = sbr.rel (0) target = $region29
    $region28: #{tpu_custom_call.1} parent=1 // pred_region
      %62 = dma.done [#allocation6], 32
    $region29: #{tpu_custom_call.1} parent=1 // pred_fallthru
      _
    %v63 = vld [vmem:[#allocation2] sm:$0xff]
    %v64 = vld [vmem:[#allocation2 + $0x8] sm:$0xff]
    %v65 = vld [vmem:[#allocation5] sm:$0xff]
    %v66 = vld [vmem:[#allocation5 + $0x8] sm:$0xff]
    %v67 = vld [vmem:[#allocation5 + $0x10] sm:$0xff]
    %v68 = vld [vmem:[#allocation5 + $0x18] sm:$0xff]
    %v69 = vld [vmem:[#allocation5 + $0x20] sm:$0xff]
    %v70 = vld [vmem:[#allocation5 + $0x28] sm:$0xff]
    %v71 = vld [vmem:[#allocation5 + $0x30] sm:$0xff]
    %v72 = vld [vmem:[#allocation5 + $0x38] sm:$0xff]
    %v73 = vld [vmem:[#allocation7] sm:$0x3]
    %v74 = vld [vmem:[%s3] sm:$0x1]
    %v76 = vperm.slane %v73, 0
    %v77 = vperm.slane %v73, 1
    %vm80 = vcmask 261120
    %v82 = vsel %vm80, %v63, 0
    %v85 = vsel %vm80, %v64, 0
    %87 = vmatpush.msra.mxu0 0.0
    %88 = vmatpush.msra.mxu0 0.0
    %89 = vmatpush.msra.mxu0 0.0
    %90 = vmatpush.msra.mxu0 0.0
    %91 = vmatpush.msra.mxu0 0.0
    %92 = vmatpush.msra.mxu0 0.0
    %93 = vmatpush.msra.mxu0 0.0
    %94 = vmatpush.msra.mxu0 0.0
    %95 = vmatpush.msra.mxu0 0.0
    %96 = vmatpush.msra.mxu0 0.0
    %97 = vmatpush.msra.mxu0 0.0
    %98 = vmatpush.msra.mxu0 0.0
    %99 = vmatpush.msra.mxu0 %v71
    %100 = vmatpush.msra.mxu0 %v69
    %101 = vmatpush.msra.mxu0 %v67
    %102 = vmatpush.msra.mxu0 %v65
    %103 = vmatmul.f32.gmra.mxu0 %v82
    %v104 = vpop.f32.mrf.mxu0
    %v105 = vadd.f32 %v76, %v104
    %106 = vmatmul.f32.gmra.mxu0 %v85
    %v107 = vpop.f32.mrf.mxu0
    %v108 = vadd.f32 %v76, %v107
    %109 = vdwg.mxu0
    %110 = vmatpush.msra.mxu0 0.0
    %111 = vmatpush.msra.mxu0 0.0
    %112 = vmatpush.msra.mxu0 0.0
    %113 = vmatpush.msra.mxu0 0.0
    %114 = vmatpush.msra.mxu0 0.0
    %115 = vmatpush.msra.mxu0 0.0
    %116 = vmatpush.msra.mxu0 0.0
    %117 = vmatpush.msra.mxu0 0.0
    %118 = vmatpush.msra.mxu0 0.0
    %119 = vmatpush.msra.mxu0 0.0
    %120 = vmatpush.msra.mxu0 0.0
    %121 = vmatpush.msra.mxu0 0.0
    %122 = vmatpush.msra.mxu0 %v72
    %123 = vmatpush.msra.mxu0 %v70
    %124 = vmatpush.msra.mxu0 %v68
    %125 = vmatpush.msra.mxu0 %v66
    %126 = vmatmul.f32.gmra.mxu0 %v82
    %v127 = vpop.f32.mrf.mxu0
    %v128 = vadd.f32 %v77, %v127
    %129 = vmatmul.f32.gmra.mxu0 %v85
    %v130 = vpop.f32.mrf.mxu0
    %v131 = vadd.f32 %v77, %v130
    %132 = vdwg.mxu0
    %v133 = vtanh.pop %v105
    %v134 = vtanh.pop %v108
    %v135 = vxor.u32 %v128, 2147483648
    %v136 = vxor.u32 %v131, 2147483648
    %v137 = vmul.f32 %v135, 1.442695
    %v138 = vpow.pop %v137
    %v139 = vmul.f32 %v136, 1.442695
    %v140 = vpow.pop %v139
    %v141 = vadd.f32 %v138, 1.0
    %v142 = vadd.f32 %v140, 1.0
    %v143 = vrcp.pop %v141
    %v144 = vmul.f32 %v141, %v143
    %v145 = vsub.f32 1.0, %v144
    %v146 = vmul.f32 %v143, %v145
    %v147 = vadd.f32 %v143, %v146
    %vm148 = vweird.f32 %v141
    %vm149 = vweird.f32 %v143
    %vm150 = vmor %vm148, %vm149
    %v151 = vsel %vm150, %v143, %v147
    %v152 = vand.u32 2147483647, %v141
    %vm153 = vcmp.eq.f32.partialorder %v152, 8.507059e+37
    %v154 = vand.u32 %v141, 2147483648
    %v155 = vor.u32 1.1754944e-38, %v154
    %v156 = vsel %vm153, %v155, %v151
    %v157 = vmul.f32 1.0, %v156
    %v158 = vrcp.pop %v142
    %v159 = vmul.f32 %v142, %v158
    %v160 = vsub.f32 1.0, %v159
    %v161 = vmul.f32 %v158, %v160
    %v162 = vadd.f32 %v158, %v161
    %vm163 = vweird.f32 %v142
    %vm164 = vweird.f32 %v158
    %vm165 = vmor %vm163, %vm164
    %v166 = vsel %vm165, %v158, %v162
    %v167 = vand.u32 2147483647, %v142
    %vm168 = vcmp.eq.f32.partialorder %v167, 8.507059e+37
    %v169 = vand.u32 %v142, 2147483648
    %v170 = vor.u32 1.1754944e-38, %v169
    %v171 = vsel %vm168, %v170, %v166
    %v172 = vmul.f32 1.0, %v171
    %v173 = vmul.f32 %v133, %v157
    %v174 = vmul.f32 %v134, %v172
    %v176 = vperm.slane %v74, 0
    %v178 = vmul.f32 %v173, %v176
    %v179 = vmul.f32 %v174, %v176
    %180 = vadd.xlane.f32.xlu0 %v178
    %v181 = vpop.xlane.xlu0 %180
    %182 = vadd.xlane.f32.xlu0 %v179
    %v183 = vpop.xlane.xlu0 %182
    %v184 = vrot.slane %v181, 4
    %v185 = vmax.f32 %v181, %v184
    %v186 = vrot.slane %v185, 2
    %v187 = vmax.f32 %v185, %v186
    %v188 = vrot.slane %v187, 1
    %v189 = vmax.f32 %v187, %v188
    %v190 = vrot.slane %v183, 4
    %v191 = vmax.f32 %v183, %v190
    %v192 = vrot.slane %v191, 2
    %v193 = vmax.f32 %v191, %v192
    %v194 = vrot.slane %v193, 1
    %v195 = vmax.f32 %v193, %v194
    %v196 = vsub.f32 %v181, %v189
    %v197 = vsub.f32 %v183, %v195
    %v198 = vmul.f32 %v196, 1.442695
    %v199 = vpow.pop %v198
    %v200 = vmul.f32 %v197, 1.442695
    %v201 = vpow.pop %v200
    %v202 = vrot.slane %v199, 4
    %v203 = vadd.f32 %v199, %v202
    %v204 = vrot.slane %v203, 2
    %v205 = vadd.f32 %v203, %v204
    %v206 = vrot.slane %v205, 1
    %v207 = vadd.f32 %v205, %v206
    %v208 = vrot.slane %v201, 4
    %v209 = vadd.f32 %v201, %v208
    %v210 = vrot.slane %v209, 2
    %v211 = vadd.f32 %v209, %v210
    %v212 = vrot.slane %v211, 1
    %v213 = vadd.f32 %v211, %v212
    %v214 = vrcp.pop %v207
    %v215 = vmul.f32 %v207, %v214
    %v216 = vsub.f32 1.0, %v215
    %v217 = vmul.f32 %v214, %v216
    %v218 = vadd.f32 %v214, %v217
    %vm219 = vweird.f32 %v207
    %vm220 = vweird.f32 %v214
    %vm221 = vmor %vm219, %vm220
    %v222 = vsel %vm221, %v214, %v218
    %v223 = vand.u32 2147483647, %v207
    %vm224 = vcmp.eq.f32.partialorder %v223, 8.507059e+37
    %v225 = vand.u32 %v207, 2147483648
    %v226 = vor.u32 1.1754944e-38, %v225
    %v227 = vsel %vm224, %v226, %v222
    %v228 = vmul.f32 %v199, %v227
    %v229 = vrcp.pop %v213
    %v230 = vmul.f32 %v213, %v229
    %v231 = vsub.f32 1.0, %v230
    %v232 = vmul.f32 %v229, %v231
    %v233 = vadd.f32 %v229, %v232
    %vm234 = vweird.f32 %v213
    %vm235 = vweird.f32 %v229
    %vm236 = vmor %vm234, %vm235
    %v237 = vsel %vm236, %v229, %v233
    %v238 = vand.u32 2147483647, %v213
    %vm239 = vcmp.eq.f32.partialorder %v238, 8.507059e+37
    %v240 = vand.u32 %v213, 2147483648
    %v241 = vor.u32 1.1754944e-38, %v240
    %v242 = vsel %vm239, %v241, %v237
    %v243 = vmul.f32 %v201, %v242
    %v244 = vmul.f32 %v228, %v63
    %v245 = vmul.f32 %v243, %v64
    %v246 = vsel %vm80, %v244, 0.0
    %v247 = vrot.slane %v246, 4
    %v248 = vadd.f32 %v246, %v247
    %v249 = vrot.slane %v248, 2
    %v250 = vadd.f32 %v248, %v249
    %v251 = vrot.slane %v250, 1
    %v252 = vadd.f32 %v250, %v251
    %v253 = vsel %vm80, %v245, 0.0
    %v254 = vrot.slane %v253, 4
    %v255 = vadd.f32 %v253, %v254
    %v256 = vrot.slane %v255, 2
    %v257 = vadd.f32 %v255, %v256
    %v258 = vrot.slane %v257, 1
    %v259 = vadd.f32 %v257, %v258
    %vm262 = vcmask 1041409
    %v263 = vsel %vm262, %v259, %v252
    %vm265 = vcmask 254976
    %266 = vst.msk [vmem:[#allocation8] sm:$0x3] %vm265, %v263
    // Predicated region
    $region30: #{tpu_custom_call.1} parent=1 // pred_check
      _
    $region31: #{tpu_custom_call.1} parent=1 // pred_check_branch
      %268 = sbr.rel (0) target = $region33
    $region32: #{tpu_custom_call.1} parent=1 // pred_region
      %270 = vsyncadd [#allocation4], 0
      %s272 = sshll.u32 [#allocation8], 4
      %s273 = int_to_ptr.vmem [resolvable:$true] %s272
      %s274 = sshll.u32 %s4, 4
      %s275 = int_to_ptr.hbm [resolvable:$true] %s274
      %277 = dma.vmem_to_hbm [thread:$0]  %s273, 32, %s275, [#allocation4]
    $region33: #{tpu_custom_call.1} parent=1 // pred_fallthru
      _
    // Predicated region
    $region34: #{tpu_custom_call.1} parent=1 // pred_check
      _
    $region35: #{tpu_custom_call.1} parent=1 // pred_check_branch
      %279 = sbr.rel (0) target = $region37
    $region36: #{tpu_custom_call.1} parent=1 // pred_region
      %281 = dma.done [#allocation4], 32
    $region37: #{tpu_custom_call.1} parent=1 // pred_fallthru
      _
    %282 = vsyncpa [#allocation3], 1
    %283 = vsyncpa [#allocation6], 1
    %284 = vsyncpa [#allocation4], 1

</llo_original>
